<compile_context>
chip_gen: v7x
topology: tpu7x:2x2x1
jax: 0.10.0
libtpu: 0.0.40
codegen_flags: <defaults>
</compile_context>

<pallas_src>
import functools

import jax
import jax.numpy as jnp
from jax.experimental import pallas as pl
from jax.experimental.pallas import tpu as pltpu

# BT601 coefficients (yuvloss uses rgb2yuv() default agreement).
WR, WG, WB = 0.299, 0.587, 0.114
VMAX, UMAX = 0.5, 0.5
SY = 219.0 / 255.0                    # luma scale
KCB = UMAX / (1.0 - WB) * (224.0 / 255.0)   # folded Cb scale
KCR = VMAX / (1.0 - WR) * (224.0 / 255.0)   # folded Cr scale


def yuvloss_kernel(x_ref, t_ref, out_ref):
    """x_ref/t_ref: (1, 3, TILE_R, 128) RGB tiles.  out_ref: (1,1,1,128) partial sum."""
    xr = jnp.clip(x_ref[0, 0, :, :], 0.0, 1.0)
    xg = jnp.clip(x_ref[0, 1, :, :], 0.0, 1.0)
    xb = jnp.clip(x_ref[0, 2, :, :], 0.0, 1.0)
    tr = jnp.clip(t_ref[0, 0, :, :], 0.0, 1.0)
    tg = jnp.clip(t_ref[0, 1, :, :], 0.0, 1.0)
    tb = jnp.clip(t_ref[0, 2, :, :], 0.0, 1.0)

    dr = xr - tr
    dg = xg - tg
    db = xb - tb

    # y  = (wr*r + wg*g + wb*b) * 219/255 + 16/255
    # cb = (b - y) * umax/(1-wb) * 224/255 + 128/255
    # cr = (r - y) * vmax/(1-wr) * 224/255 + 128/255
    # The additive offsets cancel in the x-t difference; scales are folded.
    dy = (dr * WR + dg * WG + db * WB) * SY
    dcb = (db - dy) * KCB
    dcr = (dr - dy) * KCR

    sq = dy * dy + dcb * dcb + dcr * dcr          # (TILE_R, 128), pure VPU
    # Single sublane reduce per block; lane axis is reduced in the wrapper.
    out_ref[0, 0] = jnp.sum(sq, axis=0, keepdims=True)


def _round_up(a, b):
    return ((a + b - 1) // b) * b


@functools.partial(jax.jit, static_argnames=("tile_r",))
def yuvloss(x, t, *, tile_r=1024):
    """MSE(rgb2yuv(x), rgb2yuv(t)) over NCHW float inputs with C == 3."""
    N, C, H, W = x.shape
    assert C == 3, "yuvloss expects 3-channel RGB input (NCHW)"
    HW = H * W

    # Lane/sublane-aligned padded pixel layout: (N, 3, rows_pad, 128).
    rows = pl.cdiv(HW, 128)
    if rows <= tile_r:
        tr = _round_up(rows, 8)       # single row-tile, sublane aligned
        rows_pad = tr
    else:
        tr = tile_r
        rows_pad = _round_up(rows, tile_r)
    p_pad = rows_pad * 128
    num_tiles = rows_pad // tr

    def prep(a):
        a = a.astype(jnp.float32).reshape(N, 3, HW)      # free reshape
        if p_pad != HW:
            # Same zero padding for both inputs -> zero contribution to the sum.
            a = jnp.pad(a, ((0, 0), (0, 0), (0, p_pad - HW)))
        return a.reshape(N, 3, rows_pad, 128)             # free reshape

    xf = prep(x)
    tf = prep(t)

    partials = pl.pallas_call(
        yuvloss_kernel,
        out_shape=jax.ShapeDtypeStruct((N, num_tiles, 1, 128), jnp.float32),
        grid=(N, num_tiles),
        in_specs=[
            pl.BlockSpec((1, 3, tr, 128), lambda n, i: (n, 0, i, 0)),
            pl.BlockSpec((1, 3, tr, 128), lambda n, i: (n, 0, i, 0)),
        ],
        out_specs=pl.BlockSpec((1, 1, 1, 128), lambda n, i: (n, i, 0, 0)),
        compiler_params=pltpu.CompilerParams(
            dimension_semantics=("parallel", "parallel"),
        ),
    )(xf, tf)

    # MSELoss mean is over all N*3*H*W elements of the YUV tensors (unpadded).
    return jnp.sum(partials) / jnp.float32(N * 3 * H * W)


def _yuvloss_ref(x, t):
    """Pure-JAX reference mirroring the PyTorch op order exactly."""
    def conv(img):
        r = jnp.clip(img[:, 0:1], 0.0, 1.0)
        g = jnp.clip(img[:, 1:2], 0.0, 1.0)
        b = jnp.clip(img[:, 2:3], 0.0, 1.0)
        y = (r * WR + g * WG + b * WB) * (219.0 / 255.0) + 16.0 / 255.0
        cb = (b - y) * UMAX / (1.0 - WB) * (224.0 / 255.0) + 128.0 / 255.0
        cr = (r - y) * VMAX / (1.0 - WR) * (224.0 / 255.0) + 128.0 / 255.0
        return jnp.concatenate([y, cb, cr], axis=1)
    return jnp.mean((conv(x) - conv(t)) ** 2)


if __name__ == "__main__":
    key = jax.random.PRNGKey(0)
    k1, k2, k3, k4 = jax.random.split(key, 4)

    # Small NCHW inputs consistent with the module: batch=2, 3 channels, 16x16.
    x = jax.random.uniform(k1, (2, 3, 16, 16), dtype=jnp.float32,
                           minval=-0.2, maxval=1.2)
    t = jax.random.uniform(k2, (2, 3, 16, 16), dtype=jnp.float32,
                           minval=-0.2, maxval=1.2)
    loss = jax.block_until_ready(yuvloss(x, t))
    ref = jax.block_until_ready(_yuvloss_ref(x, t))
    assert jnp.allclose(loss, ref, rtol=1e-4, atol=1e-7), (loss, ref)

    # Non-128-divisible spatial size exercises the zero-padding path.
    x2 = jax.random.uniform(k3, (1, 3, 7, 9), dtype=jnp.float32,
                            minval=-0.2, maxval=1.2)
    t2 = jax.random.uniform(k4, (1, 3, 7, 9), dtype=jnp.float32,
                            minval=-0.2, maxval=1.2)
    loss2 = jax.block_until_ready(yuvloss(x2, t2))
    ref2 = jax.block_until_ready(_yuvloss_ref(x2, t2))
    assert jnp.allclose(loss2, ref2, rtol=1e-4, atol=1e-7), (loss2, ref2)

    print("KERNEL_OK")
</pallas_src>

<mosaic_0001>
module attributes {stable_mosaic.version = 11 : i64} {
  func.func @yuvloss_kernel(%arg0: i32, %arg1: i32, %arg2: memref<1x3x8x128xf32, #tpu.memory_space<vmem>>, %arg3: memref<1x3x8x128xf32, #tpu.memory_space<vmem>>, %arg4: memref<1x1x1x128xf32, #tpu.memory_space<vmem>>) attributes {dimension_semantics = [#tpu.dimension_semantics<parallel>, #tpu.dimension_semantics<parallel>], iteration_bounds = array<i64: 2, 1>, scalar_prefetch = 0 : i64, scratch_operands = 0 : i64, tpu.core_type = #tpu.core_type<tc>, window_params = [{transform_indices = @transform_0, window_bounds = array<i64: 1, 3, 8, 128>}, {transform_indices = @transform_1, window_bounds = array<i64: 1, 3, 8, 128>}, {transform_indices = @transform_2, window_bounds = array<i64: 1, 1, 1, 128>}]} {
    %c0 = arith.constant 0 : index
    %c0_0 = arith.constant 0 : index
    %c0_1 = arith.constant 0 : index
    %c0_2 = arith.constant 0 : index
    %0 = vector.load %arg2[%c0, %c0_0, %c0_1, %c0_2] : memref<1x3x8x128xf32, #tpu.memory_space<vmem>>, vector<1x1x8x128xf32>
    %1 = vector.shape_cast %0 : vector<1x1x8x128xf32> to vector<8x128xf32>
    %cst = arith.constant 0.000000e+00 : f32
    %cst_3 = arith.constant 1.000000e+00 : f32
    %2 = vector.broadcast %cst : f32 to vector<8x128xf32>
    %3 = arith.maximumf %2, %1 : vector<8x128xf32>
    %4 = vector.broadcast %cst_3 : f32 to vector<8x128xf32>
    %5 = arith.minimumf %4, %3 : vector<8x128xf32>
    %c0_4 = arith.constant 0 : index
    %c1 = arith.constant 1 : index
    %c0_5 = arith.constant 0 : index
    %c0_6 = arith.constant 0 : index
    %6 = vector.load %arg2[%c0_4, %c1, %c0_5, %c0_6] : memref<1x3x8x128xf32, #tpu.memory_space<vmem>>, vector<1x1x8x128xf32>
    %7 = vector.shape_cast %6 : vector<1x1x8x128xf32> to vector<8x128xf32>
    %cst_7 = arith.constant 0.000000e+00 : f32
    %cst_8 = arith.constant 1.000000e+00 : f32
    %8 = vector.broadcast %cst_7 : f32 to vector<8x128xf32>
    %9 = arith.maximumf %8, %7 : vector<8x128xf32>
    %10 = vector.broadcast %cst_8 : f32 to vector<8x128xf32>
    %11 = arith.minimumf %10, %9 : vector<8x128xf32>
    %c0_9 = arith.constant 0 : index
    %c2 = arith.constant 2 : index
    %c0_10 = arith.constant 0 : index
    %c0_11 = arith.constant 0 : index
    %12 = vector.load %arg2[%c0_9, %c2, %c0_10, %c0_11] : memref<1x3x8x128xf32, #tpu.memory_space<vmem>>, vector<1x1x8x128xf32>
    %13 = vector.shape_cast %12 : vector<1x1x8x128xf32> to vector<8x128xf32>
    %cst_12 = arith.constant 0.000000e+00 : f32
    %cst_13 = arith.constant 1.000000e+00 : f32
    %14 = vector.broadcast %cst_12 : f32 to vector<8x128xf32>
    %15 = arith.maximumf %14, %13 : vector<8x128xf32>
    %16 = vector.broadcast %cst_13 : f32 to vector<8x128xf32>
    %17 = arith.minimumf %16, %15 : vector<8x128xf32>
    %c0_14 = arith.constant 0 : index
    %c0_15 = arith.constant 0 : index
    %c0_16 = arith.constant 0 : index
    %c0_17 = arith.constant 0 : index
    %18 = vector.load %arg3[%c0_14, %c0_15, %c0_16, %c0_17] : memref<1x3x8x128xf32, #tpu.memory_space<vmem>>, vector<1x1x8x128xf32>
    %19 = vector.shape_cast %18 : vector<1x1x8x128xf32> to vector<8x128xf32>
    %cst_18 = arith.constant 0.000000e+00 : f32
    %cst_19 = arith.constant 1.000000e+00 : f32
    %20 = vector.broadcast %cst_18 : f32 to vector<8x128xf32>
    %21 = arith.maximumf %20, %19 : vector<8x128xf32>
    %22 = vector.broadcast %cst_19 : f32 to vector<8x128xf32>
    %23 = arith.minimumf %22, %21 : vector<8x128xf32>
    %c0_20 = arith.constant 0 : index
    %c1_21 = arith.constant 1 : index
    %c0_22 = arith.constant 0 : index
    %c0_23 = arith.constant 0 : index
    %24 = vector.load %arg3[%c0_20, %c1_21, %c0_22, %c0_23] : memref<1x3x8x128xf32, #tpu.memory_space<vmem>>, vector<1x1x8x128xf32>
    %25 = vector.shape_cast %24 : vector<1x1x8x128xf32> to vector<8x128xf32>
    %cst_24 = arith.constant 0.000000e+00 : f32
    %cst_25 = arith.constant 1.000000e+00 : f32
    %26 = vector.broadcast %cst_24 : f32 to vector<8x128xf32>
    %27 = arith.maximumf %26, %25 : vector<8x128xf32>
    %28 = vector.broadcast %cst_25 : f32 to vector<8x128xf32>
    %29 = arith.minimumf %28, %27 : vector<8x128xf32>
    %c0_26 = arith.constant 0 : index
    %c2_27 = arith.constant 2 : index
    %c0_28 = arith.constant 0 : index
    %c0_29 = arith.constant 0 : index
    %30 = vector.load %arg3[%c0_26, %c2_27, %c0_28, %c0_29] : memref<1x3x8x128xf32, #tpu.memory_space<vmem>>, vector<1x1x8x128xf32>
    %31 = vector.shape_cast %30 : vector<1x1x8x128xf32> to vector<8x128xf32>
    %cst_30 = arith.constant 0.000000e+00 : f32
    %cst_31 = arith.constant 1.000000e+00 : f32
    %32 = vector.broadcast %cst_30 : f32 to vector<8x128xf32>
    %33 = arith.maximumf %32, %31 : vector<8x128xf32>
    %34 = vector.broadcast %cst_31 : f32 to vector<8x128xf32>
    %35 = arith.minimumf %34, %33 : vector<8x128xf32>
    %36 = arith.subf %5, %23 : vector<8x128xf32>
    %37 = arith.subf %11, %29 : vector<8x128xf32>
    %38 = arith.subf %17, %35 : vector<8x128xf32>
    %cst_32 = arith.constant 2.990000e-01 : f32
    %39 = vector.broadcast %cst_32 : f32 to vector<8x128xf32>
    %40 = arith.mulf %36, %39 : vector<8x128xf32>
    %cst_33 = arith.constant 5.870000e-01 : f32
    %41 = vector.broadcast %cst_33 : f32 to vector<8x128xf32>
    %42 = arith.mulf %37, %41 : vector<8x128xf32>
    %43 = arith.addf %40, %42 : vector<8x128xf32>
    %cst_34 = arith.constant 1.140000e-01 : f32
    %44 = vector.broadcast %cst_34 : f32 to vector<8x128xf32>
    %45 = arith.mulf %38, %44 : vector<8x128xf32>
    %46 = arith.addf %43, %45 : vector<8x128xf32>
    %cst_35 = arith.constant 0.858823538 : f32
    %47 = vector.broadcast %cst_35 : f32 to vector<8x128xf32>
    %48 = arith.mulf %46, %47 : vector<8x128xf32>
    %49 = arith.subf %38, %48 : vector<8x128xf32>
    %cst_36 = arith.constant 0.495728761 : f32
    %50 = vector.broadcast %cst_36 : f32 to vector<8x128xf32>
    %51 = arith.mulf %49, %50 : vector<8x128xf32>
    %52 = arith.subf %36, %48 : vector<8x128xf32>
    %cst_37 = arith.constant 0.626555919 : f32
    %53 = vector.broadcast %cst_37 : f32 to vector<8x128xf32>
    %54 = arith.mulf %52, %53 : vector<8x128xf32>
    %55 = arith.mulf %48, %48 : vector<8x128xf32>
    %56 = arith.mulf %51, %51 : vector<8x128xf32>
    %57 = arith.addf %55, %56 : vector<8x128xf32>
    %58 = arith.mulf %54, %54 : vector<8x128xf32>
    %59 = arith.addf %57, %58 : vector<8x128xf32>
    %cst_38 = arith.constant dense<0.000000e+00> : vector<128xf32>
    %60 = vector.multi_reduction <add>, %59, %cst_38 [0] : vector<8x128xf32> to vector<128xf32>
    %61 = vector.shape_cast %60 : vector<128xf32> to vector<1x128xf32>
    %c0_39 = arith.constant 0 : index
    %c0_40 = arith.constant 0 : index
    %c0_41 = arith.constant 0 : index
    %c0_42 = arith.constant 0 : index
    %62 = vector.load %arg4[%c0_39, %c0_40, %c0_41, %c0_42] : memref<1x1x1x128xf32, #tpu.memory_space<vmem>>, vector<1x1x1x128xf32>
    %63 = vector.shape_cast %62 : vector<1x1x1x128xf32> to vector<1x128xf32>
    %64 = vector.shape_cast %61 : vector<1x128xf32> to vector<1x1x1x128xf32>
    tpu.vector_store %arg4[%c0_39, %c0_40, %c0_41, %c0_42], %64 {strides = array<i32>} : memref<1x1x1x128xf32, #tpu.memory_space<vmem>>, vector<1x1x1x128xf32>,
    return
  }
  func.func @transform_0(%arg0: i32, %arg1: i32) -> (i32, i32, i32, i32) {
    %c0_i32 = arith.constant 0 : i32
    %c0_i32_0 = arith.constant 0 : i32
    %c0_i32_1 = arith.constant 0 : i32
    return %arg0, %c0_i32, %arg1, %c0_i32_0 : i32, i32, i32, i32
  }
  func.func @transform_1(%arg0: i32, %arg1: i32) -> (i32, i32, i32, i32) {
    %c0_i32 = arith.constant 0 : i32
    %c0_i32_0 = arith.constant 0 : i32
    %c0_i32_1 = arith.constant 0 : i32
    return %arg0, %c0_i32, %arg1, %c0_i32_0 : i32, i32, i32, i32
  }
  func.func @transform_2(%arg0: i32, %arg1: i32) -> (i32, i32, i32, i32) {
    %c0_i32 = arith.constant 0 : i32
    %c0_i32_0 = arith.constant 0 : i32
    %c0_i32_1 = arith.constant 0 : i32
    return %arg0, %arg1, %c0_i32, %c0_i32_0 : i32, i32, i32, i32
  }
}

</mosaic_0001>

<llo_original>
// kernel: yuvloss.1
$region0: #{yuvloss.1}
  #allocation0 [shape = 'u32[]', space=smem, size = 0x4, offset = 0x4, fixed_abs, tag = 'smem constant byte address 0x4 - core index']
  #allocation1 [shape = 'u32[144,128]{1,0:T(1,128)}', space=vmem, size = 0x12000, scoped, tag = 'internal scratch']
  %s0 = inlined_call_operand.vmem [shape: f32[2,3,8,128], index: 0, kind: input, shape index: {}]
  %s1 = inlined_call_operand.vmem [shape: f32[2,3,8,128], index: 1, kind: input, shape index: {}]
  %s2 = inlined_call_operand.vmem [shape: f32[2,1,1,128], index: 2, kind: output, shape index: {}]
  %s3 = sld [smem:[#allocation0]]
  $region41: #{yuvloss.1} parent=0
    _
  %s5 = ssub.s32 1, %s3
  %s6 = scalar_select 0, %s5, %s3
  loop: start=0, step=1, limit=4
  $region2: #{yuvloss.1} parent=0 // loop_pre_header
    _
  $region3: #{yuvloss.1} parent=0 // loop_header
    %s8 = sphi 0, %s12
    %p9 = scmp.ge.s32.totalorder %s8, 4
    %s15 = sphi 0, %s27
    %s16 = sphi 0, %s23
    %s17 = sphi 0, %s15
    %s18 = sphi 0, %s16
    %s19 = sphi 0, %s17
    %s20 = sphi 0, %s18
    %s32 = sphi 0, %s34
    %s35 = sphi 0, %s32
    %s36 = sphi 0, %s35
    %s52 = sphi 0, %s36
    %s60 = sphi 0, %s62
    %s63 = sphi 0, %s60
    %s64 = sphi 0, %s63
    %s80 = sphi 0, %s64
    %s88 = sphi 0, %s90
    %s91 = sphi 0, %s88
    %s92 = sphi 0, %s91
    %s108 = sphi 0, %s92
  $region4: #{yuvloss.1} parent=0 // loop_header_branch
    %11 = sbr.rel (%p9) target = $region8
  $region5: #{yuvloss.1} parent=0 // loop_body
    %s13 = ssub.s32 %s8, 1
    %s14 = ssub.s32 %s8, 2
    %s21 = sadd.s32 1, %s16
    %p22 = scmp.ge.s32.totalorder %s21, 1
    %s23 = scalar_select %p22, 0, %s21
    %s24 = sadd.s32 1, %s15
    %s25 = scalar_select %p22, %s24, %s15
    %p26 = scmp.ge.s32.totalorder %s25, 2
    %s27 = scalar_select %p26, 0, %s25
    %s28 = ssub.s32 %s15, %s27
    %s29 = ssub.s32 %s16, %s23
    %s30 = sor.u32 %s28, %s29
    %p31 = scmp.eq.s32.totalorder %s30, 0
    %s33 = sadd.s32 %s32, 1
    %s34 = scalar_select %p31, %s32, %s33
    %p37 = pneg %p31
    %p38 = scmp.eq.s32.totalorder %s8, 1
    %p39 = por %p37, %p38
    %p40 = scmp.ne.s32.totalorder %s32, %s35
    %p41 = scmp.eq.s32.totalorder %s8, 0
    %p42 = por %p40, %p41
    %p43 = scmp.ne.s32.totalorder %s32, %s35
    %p44 = scmp.eq.s32.totalorder %s13, 1
    %p45 = por %p43, %p44
    %p46 = scmp.ne.s32.totalorder %s35, %s36
    %p47 = scmp.eq.s32.totalorder %s13, 0
    %p48 = por %p46, %p47
    %p49 = scmp.ne.s32.totalorder %s35, %s36
    %p50 = scmp.eq.s32.totalorder %s14, 1
    %p51 = por %p49, %p50
    %p53 = scmp.ne.s32.totalorder %s36, %s52
    %p54 = scmp.eq.s32.totalorder %s14, 0
    %p55 = por %p53, %p54
    %s56 = ssub.s32 %s15, %s27
    %s57 = ssub.s32 %s16, %s23
    %s58 = sor.u32 %s56, %s57
    %p59 = scmp.eq.s32.totalorder %s58, 0
    %s61 = sadd.s32 %s60, 1
    %s62 = scalar_select %p59, %s60, %s61
    %p65 = pneg %p59
    %p66 = scmp.eq.s32.totalorder %s8, 1
    %p67 = por %p65, %p66
    %p68 = scmp.ne.s32.totalorder %s60, %s63
    %p69 = scmp.eq.s32.totalorder %s8, 0
    %p70 = por %p68, %p69
    %p71 = scmp.ne.s32.totalorder %s60, %s63
    %p72 = scmp.eq.s32.totalorder %s13, 1
    %p73 = por %p71, %p72
    %p74 = scmp.ne.s32.totalorder %s63, %s64
    %p75 = scmp.eq.s32.totalorder %s13, 0
    %p76 = por %p74, %p75
    %p77 = scmp.ne.s32.totalorder %s63, %s64
    %p78 = scmp.eq.s32.totalorder %s14, 1
    %p79 = por %p77, %p78
    %p81 = scmp.ne.s32.totalorder %s64, %s80
    %p82 = scmp.eq.s32.totalorder %s14, 0
    %p83 = por %p81, %p82
    %s84 = ssub.s32 %s15, %s27
    %s85 = ssub.s32 %s16, %s23
    %s86 = sor.u32 %s84, %s85
    %p87 = scmp.eq.s32.totalorder %s86, 0
    %s89 = sadd.s32 %s88, 1
    %s90 = scalar_select %p87, %s88, %s89
    %p93 = pneg %p87
    %p94 = scmp.eq.s32.totalorder %s8, 1
    %p95 = por %p93, %p94
    %p96 = scmp.ne.s32.totalorder %s88, %s91
    %p97 = scmp.eq.s32.totalorder %s8, 0
    %p98 = por %p96, %p97
    %p99 = scmp.ne.s32.totalorder %s88, %s91
    %p100 = scmp.eq.s32.totalorder %s13, 1
    %p101 = por %p99, %p100
    %p102 = scmp.ne.s32.totalorder %s91, %s92
    %p103 = scmp.eq.s32.totalorder %s13, 0
    %p104 = por %p102, %p103
    %p105 = scmp.ne.s32.totalorder %s91, %s92
    %p106 = scmp.eq.s32.totalorder %s14, 1
    %p107 = por %p105, %p106
    %p109 = scmp.ne.s32.totalorder %s92, %s108
    %p110 = scmp.eq.s32.totalorder %s14, 0
    %p111 = por %p109, %p110
    %p112 = scmp.le.s32.totalorder 1, %s8
    %p113 = scmp.lt.s32.totalorder %s8, 3
    %p114 = pnand %p112, %p113
    %p115 = pneg %p114
    // Predicated region
    $region9: #{yuvloss.1} parent=5 // pred_check
      _
    $region10: #{yuvloss.1} parent=5 // pred_check_branch
      %117 = sbr.rel (%p114) target = $region12
    $region11: #{yuvloss.1} parent=5 // pred_region
      %s118 = ssub.s32 %s8, 1
    $region12: #{yuvloss.1} parent=5 // pred_fallthru
      _
    %p119 = scmp.lt.s32.totalorder %s8, 2
    // Predicated region
    $region13: #{yuvloss.1} parent=5 // pred_check
      %p120 = pneg %p119
    $region14: #{yuvloss.1} parent=5 // pred_check_branch
      %122 = sbr.rel (%p120) target = $region16
    $region15: #{yuvloss.1} parent=5 // pred_region
      // Predicated region
      $region17: #{yuvloss.1} parent=15 // pred_check
        %p123 = pneg %p42
      $region18: #{yuvloss.1} parent=15 // pred_check_branch
        %125 = sbr.rel (%p123) target = $region20
      $region19: #{yuvloss.1} parent=15 // pred_region
        %p126 = scmp.lt.s32.totalorder %s15, 1
        %s127 = scalar_select %p126, %s15, 1
        %p128 = scmp.lt.s32.totalorder %s16, 0
        %s129 = scalar_select %p128, %s16, 0
        %s130 = smul.addr %s127, 3
        %s131 = sadd.s32 %s129, %s130
        %s132 = smul.addr %s131, 8
        %s133 = scalar_lea.vmem %s0, %s132
      $region20: #{yuvloss.1} parent=15 // pred_fallthru
        _
      // Predicated region
      $region21: #{yuvloss.1} parent=15 // pred_check
        %p134 = pneg %p70
      $region22: #{yuvloss.1} parent=15 // pred_check_branch
        %136 = sbr.rel (%p134) target = $region24
      $region23: #{yuvloss.1} parent=15 // pred_region
        %p137 = scmp.lt.s32.totalorder %s15, 1
        %s138 = scalar_select %p137, %s15, 1
        %p139 = scmp.lt.s32.totalorder %s16, 0
        %s140 = scalar_select %p139, %s16, 0
        %s141 = smul.addr %s138, 3
        %s142 = sadd.s32 %s140, %s141
        %s143 = smul.addr %s142, 8
        %s144 = scalar_lea.vmem %s1, %s143
      $region24: #{yuvloss.1} parent=15 // pred_fallthru
        _
    $region16: #{yuvloss.1} parent=5 // pred_fallthru
      _
    %p145 = scmp.le.s32.totalorder 1, %s8
    %p146 = scmp.lt.s32.totalorder %s8, 3
    %p147 = pnand %p145, %p146
    %p148 = pneg %p147
    // Predicated region
    $region25: #{yuvloss.1} parent=5 // pred_check
      _
    $region26: #{yuvloss.1} parent=5 // pred_check_branch
      %150 = sbr.rel (%p147) target = $region28
    $region27: #{yuvloss.1} parent=5 // pred_region
      %s151 = ssub.s32 %s8, 1
      %p152 = scmp.lt.s32.totalorder %s17, 1
      %s153 = scalar_select %p152, %s17, 1
      %p154 = scmp.lt.s32.totalorder %s18, 0
      %s155 = scalar_select %p154, %s18, 0
      %s156 = smul.addr %s153, 3
      %s157 = sadd.s32 %s155, %s156
      %s158 = smul.addr %s157, 8
      %s159 = scalar_lea.vmem %s0, %s158
      %p160 = pneg %p48
      %p161 = pneg %p45
      %p162 = scmp.lt.s32.totalorder %s17, 1
      %s163 = scalar_select %p162, %s17, 1
      %p164 = scmp.lt.s32.totalorder %s18, 0
      %s165 = scalar_select %p164, %s18, 0
      %s166 = smul.addr %s163, 3
      %s167 = sadd.s32 %s165, %s166
      %s168 = smul.addr %s167, 8
      %s169 = scalar_lea.vmem %s1, %s168
      %p170 = pneg %p76
      %p171 = pneg %p73
      %p172 = pneg %p104
      %p173 = pneg %p101
      %p174 = scmp.lt.s32.totalorder %s17, 1
      %s175 = scalar_select %p174, %s17, 1
      %p176 = scmp.lt.s32.totalorder %s18, 0
      %s177 = scalar_select %p176, %s18, 0
      %s178 = sadd.s32 %s177, %s175
      %s179 = scalar_lea.vmem %s2, %s178
      %p180 = scmp.lt.s32.totalorder %s17, 1
      %s181 = scalar_select %p180, %s17, 1
      %p182 = scmp.lt.s32.totalorder %s18, 0
      %s183 = scalar_select %p182, %s18, 0
      %s184 = smul.addr %s181, 3
      %s185 = sadd.s32 %s183, %s184
      %s186 = smul.addr %s185, 8
      %s187 = scalar_lea.vmem %s0, %s186
      %p188 = scmp.lt.s32.totalorder %s17, 1
      %s189 = scalar_select %p188, %s17, 1
      %p190 = scmp.lt.s32.totalorder %s18, 0
      %s191 = scalar_select %p190, %s18, 0
      %s192 = smul.addr %s189, 3
      %s193 = sadd.s32 %s191, %s192
      %s194 = smul.addr %s193, 8
      %s195 = scalar_lea.vmem %s1, %s194
      %p196 = scmp.lt.s32.totalorder %s17, 1
      %s197 = scalar_select %p196, %s17, 1
      %p198 = scmp.lt.s32.totalorder %s18, 0
      %s199 = scalar_select %p198, %s18, 0
      %s200 = sadd.s32 %s199, %s197
      %s201 = scalar_lea.vmem %s2, %s200
      %v202 = vld [vmem:[%s187] sm:$0xff]
      %v203 = vmax.f32 %v202, 0.0
      %v204 = vmin.f32 %v203, 1.0
      %s205 = scalar_lea.vmem %s187, 8
      %v206 = vld [vmem:[%s205] sm:$0xff]
      %v207 = vmax.f32 %v206, 0.0
      %v208 = vmin.f32 %v207, 1.0
      %s209 = scalar_lea.vmem %s187, 16
      %v210 = vld [vmem:[%s209] sm:$0xff]
      %v211 = vmax.f32 %v210, 0.0
      %v212 = vmin.f32 %v211, 1.0
      %v213 = vld [vmem:[%s195] sm:$0xff]
      %v214 = vmax.f32 %v213, 0.0
      %v215 = vmin.f32 %v214, 1.0
      %s216 = scalar_lea.vmem %s195, 8
      %v217 = vld [vmem:[%s216] sm:$0xff]
      %v218 = vmax.f32 %v217, 0.0
      %v219 = vmin.f32 %v218, 1.0
      %s220 = scalar_lea.vmem %s195, 16
      %v221 = vld [vmem:[%s220] sm:$0xff]
      %v222 = vmax.f32 %v221, 0.0
      %v223 = vmin.f32 %v222, 1.0
      %v224 = vsub.f32 %v204, %v215
      %v225 = vsub.f32 %v208, %v219
      %v226 = vsub.f32 %v212, %v223
      %v227 = vmul.f32 %v224, 0.299
      %v228 = vmul.f32 %v225, 0.587
      %v229 = vadd.f32 %v227, %v228
      %v230 = vmul.f32 %v226, 0.114
      %v231 = vadd.f32 %v229, %v230
      %v232 = vmul.f32 %v231, 0.85882354
      %v233 = vsub.f32 %v226, %v232
      %v234 = vmul.f32 %v233, 0.49572876
      %v235 = vsub.f32 %v224, %v232
      %v236 = vmul.f32 %v235, 0.6265559
      %v237 = vmul.f32 %v232, %v232
      %v238 = vmul.f32 %v234, %v234
      %v239 = vadd.f32 %v237, %v238
      %v240 = vmul.f32 %v236, %v236
      %v241 = vadd.f32 %v239, %v240
      %v242 = vrot.slane %v241, 4
      %v243 = vadd.f32 %v241, %v242
      %v244 = vrot.slane %v243, 2
      %v245 = vadd.f32 %v243, %v244
      %v246 = vrot.slane %v245, 1
      %v247 = vadd.f32 %v245, %v246
      %248 = vst [vmem:[%s201] sm:$0x1] %v247
      %p249 = scmp.lt.s32.totalorder %s17, 1
      %s250 = scalar_select %p249, %s17, 1
      %p251 = scmp.lt.s32.totalorder %s18, 0
      %s252 = scalar_select %p251, %s18, 0
      %s253 = sadd.s32 %s252, %s250
      %s254 = scalar_lea.vmem %s2, %s253
      // Predicated region
      $region29: #{yuvloss.1} parent=27 // pred_check
        %p255 = pneg %p101
      $region30: #{yuvloss.1} parent=27 // pred_check_branch
        %257 = sbr.rel (%p255) target = $region32
      $region31: #{yuvloss.1} parent=27 // pred_region
        _
      $region32: #{yuvloss.1} parent=27 // pred_fallthru
        _
    $region28: #{yuvloss.1} parent=5 // pred_fallthru
      _
    %p258 = scmp.le.s32.totalorder 2, %s8
    // Predicated region
    $region33: #{yuvloss.1} parent=5 // pred_check
      %p259 = pneg %p258
    $region34: #{yuvloss.1} parent=5 // pred_check_branch
      %261 = sbr.rel (%p259) target = $region36
    $region35: #{yuvloss.1} parent=5 // pred_region
      %s262 = ssub.s32 %s8, 2
      // Predicated region
      $region37: #{yuvloss.1} parent=35 // pred_check
        %p263 = pneg %p107
      $region38: #{yuvloss.1} parent=35 // pred_check_branch
        %265 = sbr.rel (%p263) target = $region40
      $region39: #{yuvloss.1} parent=35 // pred_region
        %p266 = scmp.lt.s32.totalorder %s19, 1
        %s267 = scalar_select %p266, %s19, 1
        %p268 = scmp.lt.s32.totalorder %s20, 0
        %s269 = scalar_select %p268, %s20, 0
        %s270 = sadd.s32 %s269, %s267
        %s271 = scalar_lea.vmem %s2, %s270
      $region40: #{yuvloss.1} parent=35 // pred_fallthru
        _
    $region36: #{yuvloss.1} parent=5 // pred_fallthru
      _
  $region6: #{yuvloss.1} parent=0 // loop_footer
    %s12 = sadd.s32 1, %s8
  $region7: #{yuvloss.1} parent=0 // loop_footer_branch
    %7 = sbr.rel target = $region3
  $region8: #{yuvloss.1} parent=0 // loop_exit
    _

</llo_original>
